<compile_context>
chip_gen: v7x
topology: tpu7x:2x2x1
jax: 0.10.0
libtpu: 0.0.40
codegen_flags: <defaults>
</compile_context>

<pallas_src>
import functools

import jax
import jax.numpy as jnp
from jax.experimental import pallas as pl
from jax.experimental.pallas import tpu as pltpu


def _option_a_kernel(x_ref, sel_ref, o_ref, *, pad):
    # x_ref:  (NB, C, H, W)        one batch block, native dtype
    # sel_ref:(W, Wo)              grid-invariant 0/1 column-selection matrix
    # o_ref:  (NB, C + 2*pad, Ho, Wo)
    nb, c, h, w = x_ref.shape
    _, c_out, ho, wo = o_ref.shape

    # ---- H decimation: sublane-strided read (rows 0, 2, 4, ...). Cheap. ----
    x_even = x_ref[:, :, pl.ds(0, ho, stride=2), :]            # (NB, C, Ho, W)

    # ---- W decimation: tiny gather-as-matmul on the MXU. ----
    # Fold (NB, C, Ho) into M so the systolic array rows are well used.
    lhs = x_even.reshape(nb * c * ho, w)                       # (M, W)
    y = jnp.dot(lhs, sel_ref[...],
                preferred_element_type=jnp.float32)            # (M, Wo)
    y = y.reshape(nb, c, ho, wo).astype(o_ref.dtype)

    # ---- Channel zero-pad: direct sub-slice stores (no matmul). ----
    if pad > 0:
        o_ref[:, :pad, :, :] = jnp.zeros((nb, pad, ho, wo), o_ref.dtype)
    hi = c_out - c - pad
    if hi > 0:
        o_ref[:, pad + c:, :, :] = jnp.zeros((nb, hi, ho, wo), o_ref.dtype)
    o_ref[:, pad:pad + c, :, :] = y


def _pick_batch_block(n, per_image_bytes, target_bytes=2 << 20):
    """Largest NB dividing n with ~target_bytes per step and >=2 grid steps."""
    nb = max(1, min(n, target_bytes // max(per_image_bytes, 1)))
    while nb > 1 and (n % nb != 0 or n // nb < 2):
        nb -= 1
    return int(nb)


def lambda_layer(x_nchw, planes):
    """Pallas version of
       lambda x: F.pad(x[:, :, ::2, ::2], (0,0,0,0, planes//4, planes//4), 0)."""
    n, c, h, w = x_nchw.shape
    pad = planes // 4
    c_out = c + 2 * pad
    ho, wo = (h + 1) // 2, (w + 1) // 2

    compute_dtype = (x_nchw.dtype
                     if jnp.issubdtype(x_nchw.dtype, jnp.floating)
                     else jnp.float32)

    # Grid-invariant stride-2 column-selection matrix, built once here (not
    # per grid step): sel[q, p] = 1 iff q == 2*p.
    sel_w = (jnp.arange(w)[:, None] == 2 * jnp.arange(wo)[None, :]
             ).astype(compute_dtype)

    itemsize = jnp.dtype(x_nchw.dtype).itemsize
    per_image_bytes = (c * h * w + c_out * ho * wo) * itemsize
    nb = _pick_batch_block(n, per_image_bytes)

    kernel = functools.partial(_option_a_kernel, pad=pad)

    return pl.pallas_call(
        kernel,
        out_shape=jax.ShapeDtypeStruct((n, c_out, ho, wo), x_nchw.dtype),
        grid=(n // nb,),
        in_specs=[
            pl.BlockSpec((nb, c, h, w), lambda i: (i, 0, 0, 0)),
            # Constant block index -> stays resident in VMEM across the grid.
            pl.BlockSpec((w, wo), lambda i: (0, 0)),
        ],
        out_specs=pl.BlockSpec((nb, c_out, ho, wo), lambda i: (i, 0, 0, 0)),
        compiler_params=pltpu.CompilerParams(
            dimension_semantics=("parallel",)),
    )(x_nchw, sel_w)


if __name__ == "__main__":
    key = jax.random.PRNGKey(0)
    N, C, H, W = 2, 4, 16, 16
    planes = 8  # typical option-A shortcut: planes = 2*C, pad = planes // 4 = 2

    x = jax.random.normal(key, (N, C, H, W), dtype=jnp.float32)

    out = lambda_layer(x, planes)
    out = jax.block_until_ready(out)

    # Pure-JAX reference of the same lambda.
    pad = planes // 4
    ho, wo = (H + 1) // 2, (W + 1) // 2
    ref = jnp.pad(x[:, :, ::2, ::2], ((0, 0), (pad, pad), (0, 0), (0, 0)))

    assert out.shape == (N, C + 2 * pad, ho, wo), out.shape
    assert jnp.allclose(out, ref), "Pallas kernel mismatch vs reference"
    print("KERNEL_OK")
</pallas_src>

<mosaic_0001>
module attributes {stable_mosaic.version = 11 : i64} {
  func.func @_option_a_kernel(%arg0: i32, %arg1: memref<1x4x16x16xf32, #tpu.memory_space<vmem>>, %arg2: memref<16x8xf32, #tpu.memory_space<vmem>>, %arg3: memref<1x8x8x8xf32, #tpu.memory_space<vmem>>) attributes {dimension_semantics = [#tpu.dimension_semantics<parallel>], iteration_bounds = array<i64: 2>, scalar_prefetch = 0 : i64, scratch_operands = 0 : i64, tpu.core_type = #tpu.core_type<tc>, window_params = [{transform_indices = @transform_0, window_bounds = array<i64: 1, 4, 16, 16>}, {pipeline_mode = #tpu.pipeline_mode<synchronous>, transform_indices = @transform_1, window_bounds = array<i64: 16, 8>}, {transform_indices = @transform_2, window_bounds = array<i64: 1, 8, 8, 8>}]} {
    %c0 = arith.constant 0 : index
    %c0_0 = arith.constant 0 : index
    %c0_1 = arith.constant 0 : index
    %c0_2 = arith.constant 0 : index
    %0 = tpu.strided_load %arg1[%c0, %c0_0, %c0_1, %c0_2] {strides = array<i32: 1, 1, 2, 1>} : memref<1x4x16x16xf32, #tpu.memory_space<vmem>>, vector<1x4x8x16xf32>
    %1 = vector.shape_cast %0 : vector<1x4x8x16xf32> to vector<32x16xf32>
    %c0_3 = arith.constant 0 : index
    %c0_4 = arith.constant 0 : index
    %2 = vector.load %arg2[%c0_3, %c0_4] : memref<16x8xf32, #tpu.memory_space<vmem>>, vector<16x8xf32>
    %cst = arith.constant dense<0.000000e+00> : vector<32x8xf32>
    %3 = tpu.matmul %1, %2, %cst {dimension_numbers = #tpu.dot_dimension_numbers<[1], [0], [0], [1], [0, 0, 1, 1], [], []>} : vector<32x16xf32>, vector<16x8xf32>, vector<32x8xf32> -> vector<32x8xf32>
    %4 = vector.shape_cast %3 : vector<32x8xf32> to vector<1x4x8x8xf32>
    %cst_5 = arith.constant 0.000000e+00 : f32
    %5 = vector.broadcast %cst_5 : f32 to vector<1x2x8x8xf32>
    %c0_6 = arith.constant 0 : index
    %c0_7 = arith.constant 0 : index
    %c0_8 = arith.constant 0 : index
    %c0_9 = arith.constant 0 : index
    %6 = vector.load %arg3[%c0_6, %c0_7, %c0_8, %c0_9] : memref<1x8x8x8xf32, #tpu.memory_space<vmem>>, vector<1x2x8x8xf32>
    tpu.vector_store %arg3[%c0_6, %c0_7, %c0_8, %c0_9], %5 {strides = array<i32>} : memref<1x8x8x8xf32, #tpu.memory_space<vmem>>, vector<1x2x8x8xf32>,
    %cst_10 = arith.constant 0.000000e+00 : f32
    %7 = vector.broadcast %cst_10 : f32 to vector<1x2x8x8xf32>
    %c0_11 = arith.constant 0 : index
    %c6 = arith.constant 6 : index
    %c0_12 = arith.constant 0 : index
    %c0_13 = arith.constant 0 : index
    %8 = vector.load %arg3[%c0_11, %c6, %c0_12, %c0_13] : memref<1x8x8x8xf32, #tpu.memory_space<vmem>>, vector<1x2x8x8xf32>
    tpu.vector_store %arg3[%c0_11, %c6, %c0_12, %c0_13], %7 {strides = array<i32>} : memref<1x8x8x8xf32, #tpu.memory_space<vmem>>, vector<1x2x8x8xf32>,
    %c0_14 = arith.constant 0 : index
    %c2 = arith.constant 2 : index
    %c0_15 = arith.constant 0 : index
    %c0_16 = arith.constant 0 : index
    %9 = vector.load %arg3[%c0_14, %c2, %c0_15, %c0_16] : memref<1x8x8x8xf32, #tpu.memory_space<vmem>>, vector<1x4x8x8xf32>
    tpu.vector_store %arg3[%c0_14, %c2, %c0_15, %c0_16], %4 {strides = array<i32>} : memref<1x8x8x8xf32, #tpu.memory_space<vmem>>, vector<1x4x8x8xf32>,
    return
  }
  func.func @transform_0(%arg0: i32) -> (i32, i32, i32, i32) {
    %c0_i32 = arith.constant 0 : i32
    %c0_i32_0 = arith.constant 0 : i32
    %c0_i32_1 = arith.constant 0 : i32
    %c0_i32_2 = arith.constant 0 : i32
    return %arg0, %c0_i32, %c0_i32_0, %c0_i32_1 : i32, i32, i32, i32
  }
  func.func @transform_1(%arg0: i32) -> (i32, i32) {
    %c0_i32 = arith.constant 0 : i32
    %c0_i32_0 = arith.constant 0 : i32
    %c0_i32_1 = arith.constant 0 : i32
    return %c0_i32, %c0_i32_0 : i32, i32
  }
  func.func @transform_2(%arg0: i32) -> (i32, i32, i32, i32) {
    %c0_i32 = arith.constant 0 : i32
    %c0_i32_0 = arith.constant 0 : i32
    %c0_i32_1 = arith.constant 0 : i32
    %c0_i32_2 = arith.constant 0 : i32
    return %arg0, %c0_i32, %c0_i32_0, %c0_i32_1 : i32, i32, i32, i32
  }
}

</mosaic_0001>

<llo_original>
// kernel: tpu_custom_call.1
$region0: #{tpu_custom_call.1}
  #allocation0 [shape = 'u32[]', space=smem, size = 0x4, offset = 0x4, fixed_abs, tag = 'smem constant byte address 0x4 - core index']
  #allocation1 [shape = 'u32[144,128]{1,0:T(1,128)}', space=vmem, size = 0x12000, scoped, tag = 'internal scratch']
  %s0 = inlined_call_operand.hbm [shape: f32[2,4,16,16], index: 0, kind: input, shape index: {}]
  %s1 = inlined_call_operand.vmem [shape: f32[16,8], index: 1, kind: input, shape index: {}]
  %s2 = inlined_call_operand.hbm [shape: f32[2,8,8,8], index: 2, kind: output, shape index: {}]
  %s3 = sld [smem:[#allocation0]]
  $region45: #{tpu_custom_call.1} parent=0
    _
  %s5 = ssub.s32 1, %s3
  %s6 = scalar_select 0, %s5, %s3
  $region1: #{tpu_custom_call.1} parent=0
    #allocation2 [shape = 'u8[65536]{0}', space=vmem, size = 0x10000, scoped, tag = 'input window, operand 0']
    #allocation3 [shape = 's32[2]{0}', space=sflag, size = 0x8, scoped, tag = 'scoped memory for tpu_custom_call.1']
    #allocation4 [shape = 's32[2]{0}', space=sflag, size = 0x8, scoped, tag = 'scoped memory for tpu_custom_call.1']
    #allocation5 [shape = 'u8[65536]{0}', space=vmem, size = 0x10000, scoped, tag = 'output window, operand 0']
    %7 = vsyncpa [#allocation3], 0
    %s8 = scalar_lea.sflag [#allocation3], 1
    %9 = vsyncpa %s8, 0
    %10 = vsyncpa [#allocation4], 0
    %s11 = scalar_lea.sflag [#allocation4], 1
    %12 = vsyncpa %s11, 0
    loop: start=0, step=1, limit=4
    $region2: #{tpu_custom_call.1} parent=1 // loop_pre_header
      _
    $region3: #{tpu_custom_call.1} parent=1 // loop_header
      %s14 = sphi 0, %s18
      %p15 = scmp.ge.s32.totalorder %s14, 4
      %s24 = sphi 0, %s26
      %s27 = sphi 0, %s24
      %s28 = sphi 0, %s27
      %s44 = sphi 0, %s28
      %s48 = sphi 0, %s48
      %s50 = sphi 0, %s48
      %s51 = sphi 0, %s50
      %s65 = sphi 0, %s51
      %s71 = sphi 0, %s73
      %s74 = sphi 0, %s71
      %s75 = sphi 0, %s74
      %s91 = sphi 0, %s75
    $region4: #{tpu_custom_call.1} parent=1 // loop_header_branch
      %17 = sbr.rel (%p15) target = $region8
    $region5: #{tpu_custom_call.1} parent=1 // loop_body
      %s19 = ssub.s32 %s14, 1
      %s20 = ssub.s32 %s14, 2
      %s21 = sadd.s32 %s14, 1
      %s22 = ssub.s32 %s14, %s21
      %p23 = scmp.eq.s32.totalorder %s22, 0
      %s25 = sadd.s32 %s24, 1
      %s26 = scalar_select %p23, %s24, %s25
      %p29 = pneg %p23
      %p30 = scmp.eq.s32.totalorder %s14, 1
      %p31 = por %p29, %p30
      %p32 = scmp.ne.s32.totalorder %s24, %s27
      %p33 = scmp.eq.s32.totalorder %s14, 0
      %p34 = por %p32, %p33
      %p35 = scmp.ne.s32.totalorder %s24, %s27
      %p36 = scmp.eq.s32.totalorder %s19, 1
      %p37 = por %p35, %p36
      %p38 = scmp.ne.s32.totalorder %s27, %s28
      %p39 = scmp.eq.s32.totalorder %s19, 0
      %p40 = por %p38, %p39
      %p41 = scmp.ne.s32.totalorder %s27, %s28
      %p42 = scmp.eq.s32.totalorder %s20, 1
      %p43 = por %p41, %p42
      %p45 = scmp.ne.s32.totalorder %s28, %s44
      %p46 = scmp.eq.s32.totalorder %s20, 0
      %p47 = por %p45, %p46
      %s49 = sadd.s32 %s48, 1
      %p52 = scmp.eq.s32.totalorder %s14, 1
      %p53 = scmp.ne.s32.totalorder %s48, %s50
      %p54 = scmp.eq.s32.totalorder %s14, 0
      %p55 = por %p53, %p54
      %p56 = scmp.ne.s32.totalorder %s48, %s50
      %p57 = scmp.eq.s32.totalorder %s19, 1
      %p58 = por %p56, %p57
      %p59 = scmp.ne.s32.totalorder %s50, %s51
      %p60 = scmp.eq.s32.totalorder %s19, 0
      %p61 = por %p59, %p60
      %p62 = scmp.ne.s32.totalorder %s50, %s51
      %p63 = scmp.eq.s32.totalorder %s20, 1
      %p64 = por %p62, %p63
      %p66 = scmp.ne.s32.totalorder %s51, %s65
      %p67 = scmp.eq.s32.totalorder %s20, 0
      %p68 = por %p66, %p67
      %s69 = ssub.s32 %s14, %s21
      %p70 = scmp.eq.s32.totalorder %s69, 0
      %s72 = sadd.s32 %s71, 1
      %s73 = scalar_select %p70, %s71, %s72
      %p76 = pneg %p70
      %p77 = scmp.eq.s32.totalorder %s14, 1
      %p78 = por %p76, %p77
      %p79 = scmp.ne.s32.totalorder %s71, %s74
      %p80 = scmp.eq.s32.totalorder %s14, 0
      %p81 = por %p79, %p80
      %p82 = scmp.ne.s32.totalorder %s71, %s74
      %p83 = scmp.eq.s32.totalorder %s19, 1
      %p84 = por %p82, %p83
      %p85 = scmp.ne.s32.totalorder %s74, %s75
      %p86 = scmp.eq.s32.totalorder %s19, 0
      %p87 = por %p85, %p86
      %p88 = scmp.ne.s32.totalorder %s74, %s75
      %p89 = scmp.eq.s32.totalorder %s20, 1
      %p90 = por %p88, %p89
      %p92 = scmp.ne.s32.totalorder %s75, %s91
      %p93 = scmp.eq.s32.totalorder %s20, 0
      %p94 = por %p92, %p93
      %p95 = scmp.le.s32.totalorder 1, %s14
      %p96 = scmp.lt.s32.totalorder %s14, 3
      %p97 = pnand %p95, %p96
      %p98 = pneg %p97
      // Predicated region
      $region9: #{tpu_custom_call.1} parent=5 // pred_check
        _
      $region10: #{tpu_custom_call.1} parent=5 // pred_check_branch
        %100 = sbr.rel (%p97) target = $region12
      $region11: #{tpu_custom_call.1} parent=5 // pred_region
        %s101 = ssub.s32 %s14, 1
        // Predicated region
        $region13: #{tpu_custom_call.1} parent=11 // pred_check
          %p102 = pneg %p61
        $region14: #{tpu_custom_call.1} parent=11 // pred_check_branch
          %104 = sbr.rel (%p102) target = $region16
        $region15: #{tpu_custom_call.1} parent=11 // pred_region
          _
        $region16: #{tpu_custom_call.1} parent=11 // pred_fallthru
          _
      $region12: #{tpu_custom_call.1} parent=5 // pred_fallthru
        _
      %p105 = scmp.lt.s32.totalorder %s14, 2
      // Predicated region
      $region17: #{tpu_custom_call.1} parent=5 // pred_check
        %p106 = pneg %p105
      $region18: #{tpu_custom_call.1} parent=5 // pred_check_branch
        %108 = sbr.rel (%p106) target = $region20
      $region19: #{tpu_custom_call.1} parent=5 // pred_region
        // Predicated region
        $region21: #{tpu_custom_call.1} parent=19 // pred_check
          %p109 = pneg %p34
        $region22: #{tpu_custom_call.1} parent=19 // pred_check_branch
          %111 = sbr.rel (%p109) target = $region24
        $region23: #{tpu_custom_call.1} parent=19 // pred_region
          %s112 = sand.u32 %s24, 1
          %s113 = scalar_lea.sflag [#allocation3], %s112
          %s114 = sand.u32 %s24, 1
          %s115 = smul.addr %s114, 64
          %s116 = scalar_lea.vmem [#allocation2], %s115
          %s118 = ssub.s32 1024, 1024
          %119 = vsyncadd %s113, %s118
          %s120 = smul.addr %s14, 8
          %s121 = smul.addr %s120, 128
          %s122 = scalar_lea.hbm %s0, %s121
          %s123 = sshll.u32 %s116, 4
          %s124 = int_to_ptr.vmem [resolvable:$true] %s123
          %129 = dma.hbm_to_vmem [thread:$0]  %s122, 1024, %s124, %s113, 128, 128, 8
        $region24: #{tpu_custom_call.1} parent=19 // pred_fallthru
          _
      $region20: #{tpu_custom_call.1} parent=5 // pred_fallthru
        _
      %p130 = scmp.le.s32.totalorder 1, %s14
      %p131 = scmp.lt.s32.totalorder %s14, 3
      %p132 = pnand %p130, %p131
      %p133 = pneg %p132
      // Predicated region
      $region25: #{tpu_custom_call.1} parent=5 // pred_check
        _
      $region26: #{tpu_custom_call.1} parent=5 // pred_check_branch
        %135 = sbr.rel (%p132) target = $region28
      $region27: #{tpu_custom_call.1} parent=5 // pred_region
        %s136 = ssub.s32 %s14, 1
        %s137 = sand.u32 %s27, 1
        %s138 = scalar_lea.sflag [#allocation3], %s137
        %s139 = sand.u32 %s27, 1
        %s140 = smul.addr %s139, 64
        %s141 = scalar_lea.vmem [#allocation2], %s140
        // Predicated region
        $region29: #{tpu_custom_call.1} parent=27 // pred_check
          %p142 = pneg %p40
        $region30: #{tpu_custom_call.1} parent=27 // pred_check_branch
          %144 = sbr.rel (%p142) target = $region32
        $region31: #{tpu_custom_call.1} parent=27 // pred_region
          %145 = dma.done %s138, 1024
        $region32: #{tpu_custom_call.1} parent=27 // pred_fallthru
          _
        %s146 = sand.u32 %s27, 1
        %s147 = scalar_lea.sflag [#allocation3], %s146
        %s148 = sand.u32 %s27, 1
        %s149 = smul.addr %s148, 64
        %s150 = scalar_lea.vmem [#allocation2], %s149
        %p151 = pneg %p40
        %p152 = pneg %p37
        %p153 = pneg %p61
        %p154 = pneg %p58
        %p155 = pneg %p87
        %p156 = pneg %p84
        %s157 = sand.u32 %s74, 1
        %s158 = scalar_lea.sflag [#allocation4], %s157
        %s159 = sand.u32 %s74, 1
        %s160 = smul.addr %s159, 64
        %s161 = scalar_lea.vmem [#allocation5], %s160
        %v162 = vld [vmem:[%s141] ss:$2 sm:$0xff]
        %s163 = scalar_lea.vmem %s141, 16 [#allocation2]
        %v164 = vld [vmem:[%s163] ss:$2 sm:$0xff]
        %s165 = scalar_lea.vmem %s141, 32 [#allocation2]
        %v166 = vld [vmem:[%s165] ss:$2 sm:$0xff]
        %s167 = scalar_lea.vmem %s141, 48 [#allocation2]
        %v168 = vld [vmem:[%s167] ss:$2 sm:$0xff]
        %v169 = vld [vmem:[%s1] sm:$0xff]
        %v170 = vld [vmem:[%s1 + $0x8] sm:$0xff]
        %vm171 = vcmask 130048
        %v173 = vsel %vm171, %v162, 0
        %v176 = vsel %vm171, %v164, 0
        %v179 = vsel %vm171, %v166, 0
        %v182 = vsel %vm171, %v168, 0
        %184 = vmatprep.subr.mxu0 0.0
        %185 = vmatpush1.msra.mxu0 %v169
        %186 = vmatprep.subr.mxu0 0.0
        %187 = vmatpush1.msra.mxu0 %v170
        %188 = vmatprep.subr.mxu0 0.0
        %189 = vmatpush1.msra.mxu0 0.0
        %190 = vmatprep.subr.mxu0 0.0
        %191 = vmatpush1.msra.mxu0 0.0
        %192 = vmatprep.subr.mxu0 0.0
        %193 = vmatpush1.msra.mxu0 0.0
        %194 = vmatprep.subr.mxu0 0.0
        %195 = vmatpush1.msra.mxu0 0.0
        %196 = vmatprep.subr.mxu0 0.0
        %197 = vmatpush1.msra.mxu0 0.0
        %198 = vmatprep.subr.mxu0 0.0
        %199 = vmatpush1.msra.mxu0 0.0
        %200 = vmatprep.subr.mxu0 0.0
        %201 = vmatpush1.msra.mxu0 0.0
        %202 = vmatprep.subr.mxu0 0.0
        %203 = vmatpush1.msra.mxu0 0.0
        %204 = vmatprep.subr.mxu0 0.0
        %205 = vmatpush1.msra.mxu0 0.0
        %206 = vmatprep.subr.mxu0 0.0
        %207 = vmatpush1.msra.mxu0 0.0
        %208 = vmatprep.subr.mxu0 0.0
        %209 = vmatpush1.msra.mxu0 0.0
        %210 = vmatprep.subr.mxu0 0.0
        %211 = vmatpush1.msra.mxu0 0.0
        %212 = vmatprep.subr.mxu0 0.0
        %213 = vmatpush1.msra.mxu0 0.0
        %214 = vmatprep.subr.mxu0 0.0
        %215 = vmatpush1.msra.mxu0 0.0
        %216 = vmatprep.subr.mxu0 0.0
        %217 = vmatpush1.msra.mxu0 0.0
        %218 = vmatprep.subr.mxu0 0.0
        %219 = vmatpush1.msra.mxu0 0.0
        %220 = vmatprep.subr.mxu0 0.0
        %221 = vmatpush1.msra.mxu0 0.0
        %222 = vmatprep.subr.mxu0 0.0
        %223 = vmatpush1.msra.mxu0 0.0
        %224 = vmatprep.subr.mxu0 0.0
        %225 = vmatpush1.msra.mxu0 0.0
        %226 = vmatprep.subr.mxu0 0.0
        %227 = vmatpush1.msra.mxu0 0.0
        %228 = vmatprep.subr.mxu0 0.0
        %229 = vmatpush1.msra.mxu0 0.0
        %230 = vmatprep.subr.mxu0 0.0
        %231 = vmatpush1.msra.mxu0 0.0
        %232 = vmatprep.subr.mxu0 0.0
        %233 = vmatpush1.msra.mxu0 0.0
        %234 = vmatprep.subr.mxu0 0.0
        %235 = vmatpush1.msra.mxu0 0.0
        %236 = vmatprep.subr.mxu0 0.0
        %237 = vmatpush1.msra.mxu0 0.0
        %238 = vmatprep.subr.mxu0 0.0
        %239 = vmatpush1.msra.mxu0 0.0
        %240 = vmatprep.subr.mxu0 0.0
        %241 = vmatpush1.msra.mxu0 0.0
        %242 = vmatprep.subr.mxu0 0.0
        %243 = vmatpush1.msra.mxu0 0.0
        %244 = vmatprep.subr.mxu0 0.0
        %245 = vmatpush1.msra.mxu0 0.0
        %246 = vmatprep.subr.mxu0 0.0
        %247 = vmatpush1.msra.mxu0 0.0
        %248 = vmatprep.mubr.f32.mxu0 0.0
        %249 = vmatmul.mubr.f32.gmra.mrb[0].mxu0 %v173
        %v250 = vpop.f32.mrb[0].mxu0
        %v251 = vadd.f32 0.0, %v250
        %v252 = vpop.f32.mrb[0].mxu0
        %253 = vmatprep.mubr.f32.mxu0 0.0
        %254 = vmatmul.mubr.f32.gmra.mrb[0].mxu0 %v176
        %v255 = vpop.f32.mrb[0].mxu0
        %v256 = vadd.f32 0.0, %v255
        %v257 = vpop.f32.mrb[0].mxu0
        %258 = vmatprep.mubr.f32.mxu0 0.0
        %259 = vmatmul.mubr.f32.gmra.mrb[0].mxu0 %v179
        %v260 = vpop.f32.mrb[0].mxu0
        %v261 = vadd.f32 0.0, %v260
        %v262 = vpop.f32.mrb[0].mxu0
        %263 = vmatprep.mubr.f32.mxu0 0.0
        %264 = vmatmul.mubr.f32.gmra.mrb[0].mxu0 %v182
        %v265 = vpop.f32.mrb[0].mxu0
        %v266 = vadd.f32 0.0, %v265
        %v267 = vpop.f32.mrb[0].mxu0
        %268 = vdwg.mxu0
        %vm269 = vcmask 64512
        %270 = vst.msk [vmem:[%s161] sm:$0xff] %vm269, 0.0
        %271 = vst.msk [vmem:[%s161 + $0x8] sm:$0xff] %vm269, 0.0
        %s272 = scalar_lea.vmem %s161, 48 [#allocation5]
        %273 = vst.msk [vmem:[%s272] sm:$0xff] %vm269, 0.0
        %274 = vst.msk [vmem:[%s272 + $0x8] sm:$0xff] %vm269, 0.0
        %s275 = scalar_lea.vmem %s161, 16 [#allocation5]
        %276 = vst.msk [vmem:[%s275] sm:$0xff] %vm269, %v251
        %277 = vst.msk [vmem:[%s275 + $0x8] sm:$0xff] %vm269, %v256
        %278 = vst.msk [vmem:[%s275 + $0x10] sm:$0xff] %vm269, %v261
        %279 = vst.msk [vmem:[%s275 + $0x18] sm:$0xff] %vm269, %v266
        %s280 = sand.u32 %s74, 1
        %s281 = scalar_lea.sflag [#allocation4], %s280
        %s282 = sand.u32 %s74, 1
        %s283 = smul.addr %s282, 64
        %s284 = scalar_lea.vmem [#allocation5], %s283
        // Predicated region
        $region33: #{tpu_custom_call.1} parent=27 // pred_check
          %p285 = pneg %p84
        $region34: #{tpu_custom_call.1} parent=27 // pred_check_branch
          %287 = sbr.rel (%p285) target = $region36
        $region35: #{tpu_custom_call.1} parent=27 // pred_region
          %s289 = ssub.s32 1024, 1024
          %290 = vsyncadd %s281, %s289
          %s291 = smul.addr %s19, 8
          %s292 = smul.addr %s291, 128
          %s293 = scalar_lea.hbm %s2, %s292
          %s294 = sshll.u32 %s284, 4
          %s295 = int_to_ptr.vmem [resolvable:$true] %s294
          %300 = dma.vmem_to_hbm [thread:$0]  %s295, 1024, %s293, %s281, 128, 128, 8
        $region36: #{tpu_custom_call.1} parent=27 // pred_fallthru
          _
      $region28: #{tpu_custom_call.1} parent=5 // pred_fallthru
        _
      %p301 = scmp.le.s32.totalorder 2, %s14
      // Predicated region
      $region37: #{tpu_custom_call.1} parent=5 // pred_check
        %p302 = pneg %p301
      $region38: #{tpu_custom_call.1} parent=5 // pred_check_branch
        %304 = sbr.rel (%p302) target = $region40
      $region39: #{tpu_custom_call.1} parent=5 // pred_region
        %s305 = ssub.s32 %s14, 2
        // Predicated region
        $region41: #{tpu_custom_call.1} parent=39 // pred_check
          %p306 = pneg %p90
        $region42: #{tpu_custom_call.1} parent=39 // pred_check_branch
          %308 = sbr.rel (%p306) target = $region44
        $region43: #{tpu_custom_call.1} parent=39 // pred_region
          %s309 = sand.u32 %s75, 1
          %s310 = scalar_lea.sflag [#allocation4], %s309
          %s311 = sand.u32 %s75, 1
          %s312 = smul.addr %s311, 64
          %s313 = scalar_lea.vmem [#allocation5], %s312
          %314 = dma.done %s310, 1024
        $region44: #{tpu_custom_call.1} parent=39 // pred_fallthru
          _
      $region40: #{tpu_custom_call.1} parent=5 // pred_fallthru
        _
    $region6: #{tpu_custom_call.1} parent=1 // loop_footer
      %s18 = sadd.s32 1, %s14
    $region7: #{tpu_custom_call.1} parent=1 // loop_footer_branch
      %13 = sbr.rel target = $region3
    $region8: #{tpu_custom_call.1} parent=1 // loop_exit
      _
    %315 = vsyncpa [#allocation3], 1
    %s316 = scalar_lea.sflag [#allocation3], 1
    %317 = vsyncpa %s316, 1
    %318 = vsyncpa [#allocation4], 1
    %s319 = scalar_lea.sflag [#allocation4], 1
    %320 = vsyncpa %s319, 1

</llo_original>
